<compile_context>
chip_gen: v5e
topology: v5e:2x2
jax: 0.10.0
libtpu: 0.0.40
codegen_flags: <defaults>
</compile_context>

<pallas_src>
import jax
import jax.numpy as jnp
from jax.experimental import pallas as pl
from jax.experimental.pallas import tpu as pltpu


def _round_up(x, m):
    return ((x + m - 1) // m) * m


def _vmem_capacity_bytes():
    try:
        return int(pltpu.get_tpu_info().vmem_capacity_bytes)
    except Exception:
        return 64 * 1024 * 1024        # conservative fallback: v7x per-TC VMEM


def _choose_tiles(M, K, Cout, in_itemsize, out_itemsize):
    """Pick (tm, tn, cout_pad, vmem_limit) from this generation's VMEM capacity.

    Physical VMEM accounting uses (8,128) tile padding:
      activation block (tm, K)  -> tm        x round_up(K,128) lanes
      weight block     (K, tn)  -> round_up(K,8) x tn
      output block     (tm, .)  -> tm        x tn lanes
    Inputs/outputs are double-buffered by the pipeline; the weight/bias are
    grid-invariant but we still budget two buffers to stay conservative.
    """
    cap = _vmem_capacity_bytes()
    budget = int(0.70 * cap)                  # headroom for Mosaic internal scratch
    K_lane = _round_up(K, 128)
    K_sub = _round_up(K, 8)
    Cout_p = _round_up(Cout, 128)

    def w_bytes(tn):                          # double-buffered weight + bias
        return 2 * (K_sub * tn * in_itemsize + 8 * tn * 4)

    # RHS tile width: keep the whole (padded) Cout resident when it fits,
    # otherwise tile Cout in multiples of 256 (v6e/v7x MXU is 2x256 wide).
    tn = Cout_p
    while tn > 256 and w_bytes(tn) > budget // 3:
        tn = max(256, _round_up(tn // 2, 256))
    cout_pad = _round_up(Cout_p, tn)          # == round_up(Cout, tn)

    fixed = w_bytes(tn) + (2 << 20)           # + internal scratch headroom

    def step_bytes(tm):                       # double-buffered input + output blocks
        return 2 * tm * (K_lane * in_itemsize + tn * out_itemsize)

    tm = 2048
    while tm > 8 and fixed + step_bytes(tm) > budget:
        tm //= 2
    tm = max(8, min(tm, _round_up(M, 8)))     # multiple of 8 (sublane)

    need = fixed + step_bytes(tm)
    vmem_limit = int(min(max(need + (4 << 20), 16 << 20), 0.90 * cap))
    return tm, tn, cout_pad, vmem_limit


def _patch_gemm_bias_relu_kernel(p_ref, w_ref, b_ref, o_ref):
    # p_ref: (tm, K) compute dtype, w_ref: (K, tn) lane-padded compute dtype,
    # b_ref: (1, tn) f32, o_ref: (tm, Cout_block) with Cout_block <= tn.
    acc = jnp.dot(p_ref[...], w_ref[...], preferred_element_type=jnp.float32)
    acc = jnp.maximum(acc + b_ref[...], 0.0)
    o_ref[...] = acc[:, : o_ref.shape[-1]].astype(o_ref.dtype)


def downsampling_conv_block(x, w, b, *, stride=2, channels_last=False,
                            compute_dtype=None):
    """Conv3d(kernel=stride, stride=stride, padding=0) + ReLU.

    x: (N, Cin, D, H, W); w: (Cout, Cin, s, s, s); b: (Cout,).
    Returns (N, Cout, Do, Ho, Wo), or (N, Do, Ho, Wo, Cout) with
    channels_last=True (skips the final layout transpose / HBM pass).
    """
    N, Cin, D, H, W = x.shape
    Cout = w.shape[0]
    s = stride
    Do, Ho, Wo = D // s, H // s, W // s
    # VALID conv: drop trailing remainders (matches PyTorch floor behaviour).
    x = x[:, :, : Do * s, : Ho * s, : Wo * s]

    K = Cin * s * s * s
    M = N * Do * Ho * Wo
    out_dtype = x.dtype
    cdt = jnp.dtype(compute_dtype) if compute_dtype is not None else jnp.dtype(x.dtype)

    # Non-overlapping s^3 patches -> matmul rows, K-order = (cin, kd, kh, kw).
    # allow_input_fusion below lets XLA fuse this reshape/transpose into the
    # kernel's input DMA instead of materializing `p` in HBM.
    p = x.reshape(N, Cin, Do, s, Ho, s, Wo, s)
    p = p.transpose(0, 2, 4, 6, 1, 3, 5, 7).reshape(M, K).astype(cdt)

    in_itemsize = jnp.dtype(cdt).itemsize
    out_itemsize = jnp.dtype(out_dtype).itemsize
    tm, tn, cout_pad, vmem_limit = _choose_tiles(M, K, Cout, in_itemsize, out_itemsize)

    # Weight (Cout, Cin, s, s, s) -> (K, cout_pad): lane-padded RHS keeps the
    # MXU feed aligned; padded columns are zero and are never stored (the
    # output below is written unpadded).
    w2 = w.reshape(Cout, K).T.astype(cdt)
    if cout_pad != Cout:
        w2 = jnp.pad(w2, ((0, 0), (0, cout_pad - Cout)))
    b2 = jnp.zeros((1, cout_pad), jnp.float32).at[0, :Cout].set(b.astype(jnp.float32))

    n_cout_tiles = cout_pad // tn
    if n_cout_tiles == 1:
        grid = (pl.cdiv(M, tm),)
        in_specs = [
            pl.BlockSpec((tm, K), lambda i: (i, 0)),
            pl.BlockSpec((K, tn), lambda i: (0, 0)),
            pl.BlockSpec((1, tn), lambda i: (0, 0)),
        ]
        out_specs = pl.BlockSpec((tm, Cout), lambda i: (i, 0))   # unpadded store
        dims = ("parallel",)
    else:
        # Very wide layers: tile Cout so the resident weight fits VMEM.
        grid = (pl.cdiv(M, tm), n_cout_tiles)
        in_specs = [
            pl.BlockSpec((tm, K), lambda i, j: (i, 0)),
            pl.BlockSpec((K, tn), lambda i, j: (0, j)),
            pl.BlockSpec((1, tn), lambda i, j: (0, j)),
        ]
        out_specs = pl.BlockSpec((tm, tn), lambda i, j: (i, j))
        dims = ("parallel", "parallel")

    out = pl.pallas_call(
        _patch_gemm_bias_relu_kernel,
        out_shape=jax.ShapeDtypeStruct((M, Cout), out_dtype),
        grid_spec=pltpu.PrefetchScalarGridSpec(
            num_scalar_prefetch=0,
            grid=grid,
            in_specs=in_specs,
            out_specs=out_specs,
        ),
        compiler_params=pltpu.CompilerParams(
            dimension_semantics=dims,                       # megacore on v7x
            vmem_limit_bytes=vmem_limit,
            allow_input_fusion=[True, False, False],        # fuse patchify into DMA
        ),
    )(p, w2, b2)

    out = out.reshape(N, Do, Ho, Wo, Cout)
    if channels_last:
        return out                          # skip the NDHWC->NCDHW HBM pass
    return out.transpose(0, 4, 1, 2, 3)


def _reference(x, w, b, stride):
    # Pure-JAX reference mirroring the PyTorch forward (Conv3d + ReLU).
    y = jax.lax.conv_general_dilated(
        x, w,
        window_strides=(stride, stride, stride),
        padding="VALID",
        dimension_numbers=("NCDHW", "OIDHW", "NCDHW"),
    )
    y = y + b[None, :, None, None, None]
    return jnp.maximum(y, 0.0)


if __name__ == "__main__":
    # Small shapes consistent with the module: stride=2, kernel=2, no padding.
    N, Cin, Cout, D, H, W = 2, 4, 8, 16, 16, 16
    stride = 2

    key = jax.random.PRNGKey(0)
    kx, kw, kb = jax.random.split(key, 3)
    x = jax.random.normal(kx, (N, Cin, D, H, W), dtype=jnp.float32)
    # Conv3d(Cin, Cout, kernel_size=2, stride=2).weight -> (Cout, Cin, 2, 2, 2)
    w = 0.1 * jax.random.normal(kw, (Cout, Cin, stride, stride, stride),
                                dtype=jnp.float32)
    b = 0.1 * jax.random.normal(kb, (Cout,), dtype=jnp.float32)

    y = jax.block_until_ready(downsampling_conv_block(x, w, b, stride=stride))
    y_cl = jax.block_until_ready(
        downsampling_conv_block(x, w, b, stride=stride, channels_last=True))

    y_ref = _reference(x, w, b, stride)
    assert y.shape == y_ref.shape == (N, Cout, D // stride, H // stride, W // stride)
    assert jnp.allclose(y, y_ref, rtol=1e-5, atol=2e-5), float(
        jnp.max(jnp.abs(y - y_ref)))
    assert jnp.allclose(y_cl, jnp.transpose(y_ref, (0, 2, 3, 4, 1)),
                        rtol=1e-5, atol=2e-5)
    print("KERNEL_OK")
</pallas_src>

<mosaic_0001>
module attributes {stable_mosaic.version = 11 : i64} {
  func.func @_patch_gemm_bias_relu_kernel(%arg0: i32, %arg1: memref<1024x32xf32, #tpu.memory_space<vmem>>, %arg2: memref<32x128xf32, #tpu.memory_space<vmem>>, %arg3: memref<1x128xf32, #tpu.memory_space<vmem>>, %arg4: memref<1024x8xf32, #tpu.memory_space<vmem>>) attributes {dimension_semantics = [#tpu.dimension_semantics<parallel>], iteration_bounds = array<i64: 1>, scalar_prefetch = 0 : i64, scratch_operands = 0 : i64, tpu.core_type = #tpu.core_type<tc>, window_params = [{transform_indices = @transform_0, window_bounds = array<i64: 1024, 32>}, {pipeline_mode = #tpu.pipeline_mode<synchronous>, transform_indices = @transform_1, window_bounds = array<i64: 32, 128>}, {pipeline_mode = #tpu.pipeline_mode<synchronous>, transform_indices = @transform_2, window_bounds = array<i64: 1, 128>}, {transform_indices = @transform_3, window_bounds = array<i64: 1024, 8>}]} {
    %c0 = arith.constant 0 : index
    %c0_0 = arith.constant 0 : index
    %0 = vector.load %arg1[%c0, %c0_0] : memref<1024x32xf32, #tpu.memory_space<vmem>>, vector<1024x32xf32>
    %c0_1 = arith.constant 0 : index
    %c0_2 = arith.constant 0 : index
    %1 = vector.load %arg2[%c0_1, %c0_2] : memref<32x128xf32, #tpu.memory_space<vmem>>, vector<32x128xf32>
    %cst = arith.constant dense<0.000000e+00> : vector<1024x128xf32>
    %2 = tpu.matmul %0, %1, %cst {dimension_numbers = #tpu.dot_dimension_numbers<[1], [0], [0], [1], [0, 0, 1, 1], [], []>} : vector<1024x32xf32>, vector<32x128xf32>, vector<1024x128xf32> -> vector<1024x128xf32>
    %c0_3 = arith.constant 0 : index
    %c0_4 = arith.constant 0 : index
    %3 = vector.load %arg3[%c0_3, %c0_4] : memref<1x128xf32, #tpu.memory_space<vmem>>, vector<1x128xf32>
    %4 = vector.broadcast %3 : vector<1x128xf32> to vector<1024x128xf32>
    %5 = arith.addf %2, %4 : vector<1024x128xf32>
    %cst_5 = arith.constant 0.000000e+00 : f32
    %6 = vector.broadcast %cst_5 : f32 to vector<1024x128xf32>
    %7 = arith.maximumf %5, %6 : vector<1024x128xf32>
    %8 = vector.extract_strided_slice %7 {offsets = [0, 0], sizes = [1024, 8], strides = [1, 1]} : vector<1024x128xf32> to vector<1024x8xf32>
    %c0_6 = arith.constant 0 : index
    %c0_7 = arith.constant 0 : index
    %9 = vector.load %arg4[%c0_6, %c0_7] : memref<1024x8xf32, #tpu.memory_space<vmem>>, vector<1024x8xf32>
    tpu.vector_store %arg4[%c0_6, %c0_7], %8 {strides = array<i32>} : memref<1024x8xf32, #tpu.memory_space<vmem>>, vector<1024x8xf32>,
    return
  }
  func.func @transform_0(%arg0: i32) -> (i32, i32) {
    %c0_i32 = arith.constant 0 : i32
    %c0_i32_0 = arith.constant 0 : i32
    return %arg0, %c0_i32 : i32, i32
  }
  func.func @transform_1(%arg0: i32) -> (i32, i32) {
    %c0_i32 = arith.constant 0 : i32
    %c0_i32_0 = arith.constant 0 : i32
    %c0_i32_1 = arith.constant 0 : i32
    return %c0_i32, %c0_i32_0 : i32, i32
  }
  func.func @transform_2(%arg0: i32) -> (i32, i32) {
    %c0_i32 = arith.constant 0 : i32
    %c0_i32_0 = arith.constant 0 : i32
    %c0_i32_1 = arith.constant 0 : i32
    return %c0_i32, %c0_i32_0 : i32, i32
  }
  func.func @transform_3(%arg0: i32) -> (i32, i32) {
    %c0_i32 = arith.constant 0 : i32
    %c0_i32_0 = arith.constant 0 : i32
    return %arg0, %c0_i32 : i32, i32
  }
}

</mosaic_0001>

<llo_original>
// kernel: tpu_custom_call.1
$region0: #{tpu_custom_call.1}
  #allocation0 [shape = 'u32[]', space=smem, size = 0x4, offset = 0x4, fixed_abs, tag = 'smem constant byte address 0x4 - core index']
  #allocation1 [shape = 'u32[72,128]{1,0:T(1,128)}', space=vmem, size = 0x9000, scoped, tag = 'internal scratch']
  %s0 = inlined_call_operand.vmem [shape: f32[1024,32], index: 0, kind: input, shape index: {}]
  %s1 = inlined_call_operand.vmem [shape: f32[32,128], index: 1, kind: input, shape index: {}]
  %s2 = inlined_call_operand.vmem [shape: f32[1,128], index: 2, kind: input, shape index: {}]
  %s3 = inlined_call_operand.vmem [shape: f32[1024,8], index: 3, kind: output, shape index: {}]
  %s4 = sld [smem:[#allocation0]]
  $region22: #{tpu_custom_call.1} parent=0
    _
  %s6 = ssub.s32 1, %s4
  %s7 = scalar_select 0, %s6, %s4
  // Predicated region
  $region2: #{tpu_custom_call.1} parent=0 // pred_check
    _
  $region3: #{tpu_custom_call.1} parent=0 // pred_check_branch
    %9 = sbr.rel (0) target = $region5
  $region4: #{tpu_custom_call.1} parent=0 // pred_region
    _
  $region5: #{tpu_custom_call.1} parent=0 // pred_fallthru
    _
  // Predicated region
  $region6: #{tpu_custom_call.1} parent=0 // pred_check
    _
  $region7: #{tpu_custom_call.1} parent=0 // pred_check_branch
    %11 = sbr.rel (0) target = $region9
  $region8: #{tpu_custom_call.1} parent=0 // pred_region
    _
  $region9: #{tpu_custom_call.1} parent=0 // pred_fallthru
    _
  // Predicated region
  $region10: #{tpu_custom_call.1} parent=0 // pred_check
    _
  $region11: #{tpu_custom_call.1} parent=0 // pred_check_branch
    %13 = sbr.rel (0) target = $region13
  $region12: #{tpu_custom_call.1} parent=0 // pred_region
    _
  $region13: #{tpu_custom_call.1} parent=0 // pred_fallthru
    _
  %v14 = vld [vmem:[%s0] sm:$0xff]
  %v15 = vld [vmem:[%s0 + $0x8] sm:$0xff]
  %v16 = vld [vmem:[%s0 + $0x10] sm:$0xff]
  %v17 = vld [vmem:[%s0 + $0x18] sm:$0xff]
  %v18 = vld [vmem:[%s0 + $0x20] sm:$0xff]
  %v19 = vld [vmem:[%s0 + $0x28] sm:$0xff]
  %v20 = vld [vmem:[%s0 + $0x30] sm:$0xff]
  %v21 = vld [vmem:[%s0 + $0x38] sm:$0xff]
  %v22 = vld [vmem:[%s0 + $0x40] sm:$0xff]
  %v23 = vld [vmem:[%s0 + $0x48] sm:$0xff]
  %v24 = vld [vmem:[%s0 + $0x50] sm:$0xff]
  %v25 = vld [vmem:[%s0 + $0x58] sm:$0xff]
  %v26 = vld [vmem:[%s0 + $0x60] sm:$0xff]
  %v27 = vld [vmem:[%s0 + $0x68] sm:$0xff]
  %v28 = vld [vmem:[%s0 + $0x70] sm:$0xff]
  %v29 = vld [vmem:[%s0 + $0x78] sm:$0xff]
  %v30 = vld [vmem:[%s0 + $0x80] sm:$0xff]
  %v31 = vld [vmem:[%s0 + $0x88] sm:$0xff]
  %v32 = vld [vmem:[%s0 + $0x90] sm:$0xff]
  %v33 = vld [vmem:[%s0 + $0x98] sm:$0xff]
  %v34 = vld [vmem:[%s0 + $0xa0] sm:$0xff]
  %v35 = vld [vmem:[%s0 + $0xa8] sm:$0xff]
  %v36 = vld [vmem:[%s0 + $0xb0] sm:$0xff]
  %v37 = vld [vmem:[%s0 + $0xb8] sm:$0xff]
  %v38 = vld [vmem:[%s0 + $0xc0] sm:$0xff]
  %v39 = vld [vmem:[%s0 + $0xc8] sm:$0xff]
  %v40 = vld [vmem:[%s0 + $0xd0] sm:$0xff]
  %v41 = vld [vmem:[%s0 + $0xd8] sm:$0xff]
  %v42 = vld [vmem:[%s0 + $0xe0] sm:$0xff]
  %v43 = vld [vmem:[%s0 + $0xe8] sm:$0xff]
  %v44 = vld [vmem:[%s0 + $0xf0] sm:$0xff]
  %v45 = vld [vmem:[%s0 + $0xf8] sm:$0xff]
  %v46 = vld [vmem:[%s0 + $0x100] sm:$0xff]
  %v47 = vld [vmem:[%s0 + $0x108] sm:$0xff]
  %v48 = vld [vmem:[%s0 + $0x110] sm:$0xff]
  %v49 = vld [vmem:[%s0 + $0x118] sm:$0xff]
  %v50 = vld [vmem:[%s0 + $0x120] sm:$0xff]
  %v51 = vld [vmem:[%s0 + $0x128] sm:$0xff]
  %v52 = vld [vmem:[%s0 + $0x130] sm:$0xff]
  %v53 = vld [vmem:[%s0 + $0x138] sm:$0xff]
  %v54 = vld [vmem:[%s0 + $0x140] sm:$0xff]
  %v55 = vld [vmem:[%s0 + $0x148] sm:$0xff]
  %v56 = vld [vmem:[%s0 + $0x150] sm:$0xff]
  %v57 = vld [vmem:[%s0 + $0x158] sm:$0xff]
  %v58 = vld [vmem:[%s0 + $0x160] sm:$0xff]
  %v59 = vld [vmem:[%s0 + $0x168] sm:$0xff]
  %v60 = vld [vmem:[%s0 + $0x170] sm:$0xff]
  %v61 = vld [vmem:[%s0 + $0x178] sm:$0xff]
  %v62 = vld [vmem:[%s0 + $0x180] sm:$0xff]
  %v63 = vld [vmem:[%s0 + $0x188] sm:$0xff]
  %v64 = vld [vmem:[%s0 + $0x190] sm:$0xff]
  %v65 = vld [vmem:[%s0 + $0x198] sm:$0xff]
  %v66 = vld [vmem:[%s0 + $0x1a0] sm:$0xff]
  %v67 = vld [vmem:[%s0 + $0x1a8] sm:$0xff]
  %v68 = vld [vmem:[%s0 + $0x1b0] sm:$0xff]
  %v69 = vld [vmem:[%s0 + $0x1b8] sm:$0xff]
  %v70 = vld [vmem:[%s0 + $0x1c0] sm:$0xff]
  %v71 = vld [vmem:[%s0 + $0x1c8] sm:$0xff]
  %v72 = vld [vmem:[%s0 + $0x1d0] sm:$0xff]
  %v73 = vld [vmem:[%s0 + $0x1d8] sm:$0xff]
  %v74 = vld [vmem:[%s0 + $0x1e0] sm:$0xff]
  %v75 = vld [vmem:[%s0 + $0x1e8] sm:$0xff]
  %v76 = vld [vmem:[%s0 + $0x1f0] sm:$0xff]
  %v77 = vld [vmem:[%s0 + $0x1f8] sm:$0xff]
  %v78 = vld [vmem:[%s0 + $0x200] sm:$0xff]
  %v79 = vld [vmem:[%s0 + $0x208] sm:$0xff]
  %v80 = vld [vmem:[%s0 + $0x210] sm:$0xff]
  %v81 = vld [vmem:[%s0 + $0x218] sm:$0xff]
  %v82 = vld [vmem:[%s0 + $0x220] sm:$0xff]
  %v83 = vld [vmem:[%s0 + $0x228] sm:$0xff]
  %v84 = vld [vmem:[%s0 + $0x230] sm:$0xff]
  %v85 = vld [vmem:[%s0 + $0x238] sm:$0xff]
  %v86 = vld [vmem:[%s0 + $0x240] sm:$0xff]
  %v87 = vld [vmem:[%s0 + $0x248] sm:$0xff]
  %v88 = vld [vmem:[%s0 + $0x250] sm:$0xff]
  %v89 = vld [vmem:[%s0 + $0x258] sm:$0xff]
  %v90 = vld [vmem:[%s0 + $0x260] sm:$0xff]
  %v91 = vld [vmem:[%s0 + $0x268] sm:$0xff]
  %v92 = vld [vmem:[%s0 + $0x270] sm:$0xff]
  %v93 = vld [vmem:[%s0 + $0x278] sm:$0xff]
  %v94 = vld [vmem:[%s0 + $0x280] sm:$0xff]
  %v95 = vld [vmem:[%s0 + $0x288] sm:$0xff]
  %v96 = vld [vmem:[%s0 + $0x290] sm:$0xff]
  %v97 = vld [vmem:[%s0 + $0x298] sm:$0xff]
  %v98 = vld [vmem:[%s0 + $0x2a0] sm:$0xff]
  %v99 = vld [vmem:[%s0 + $0x2a8] sm:$0xff]
  %v100 = vld [vmem:[%s0 + $0x2b0] sm:$0xff]
  %v101 = vld [vmem:[%s0 + $0x2b8] sm:$0xff]
  %v102 = vld [vmem:[%s0 + $0x2c0] sm:$0xff]
  %v103 = vld [vmem:[%s0 + $0x2c8] sm:$0xff]
  %v104 = vld [vmem:[%s0 + $0x2d0] sm:$0xff]
  %v105 = vld [vmem:[%s0 + $0x2d8] sm:$0xff]
  %v106 = vld [vmem:[%s0 + $0x2e0] sm:$0xff]
  %v107 = vld [vmem:[%s0 + $0x2e8] sm:$0xff]
  %v108 = vld [vmem:[%s0 + $0x2f0] sm:$0xff]
  %v109 = vld [vmem:[%s0 + $0x2f8] sm:$0xff]
  %v110 = vld [vmem:[%s0 + $0x300] sm:$0xff]
  %v111 = vld [vmem:[%s0 + $0x308] sm:$0xff]
  %v112 = vld [vmem:[%s0 + $0x310] sm:$0xff]
  %v113 = vld [vmem:[%s0 + $0x318] sm:$0xff]
  %v114 = vld [vmem:[%s0 + $0x320] sm:$0xff]
  %v115 = vld [vmem:[%s0 + $0x328] sm:$0xff]
  %v116 = vld [vmem:[%s0 + $0x330] sm:$0xff]
  %v117 = vld [vmem:[%s0 + $0x338] sm:$0xff]
  %v118 = vld [vmem:[%s0 + $0x340] sm:$0xff]
  %v119 = vld [vmem:[%s0 + $0x348] sm:$0xff]
  %v120 = vld [vmem:[%s0 + $0x350] sm:$0xff]
  %v121 = vld [vmem:[%s0 + $0x358] sm:$0xff]
  %v122 = vld [vmem:[%s0 + $0x360] sm:$0xff]
  %v123 = vld [vmem:[%s0 + $0x368] sm:$0xff]
  %v124 = vld [vmem:[%s0 + $0x370] sm:$0xff]
  %v125 = vld [vmem:[%s0 + $0x378] sm:$0xff]
  %v126 = vld [vmem:[%s0 + $0x380] sm:$0xff]
  %v127 = vld [vmem:[%s0 + $0x388] sm:$0xff]
  %v128 = vld [vmem:[%s0 + $0x390] sm:$0xff]
  %v129 = vld [vmem:[%s0 + $0x398] sm:$0xff]
  %v130 = vld [vmem:[%s0 + $0x3a0] sm:$0xff]
  %v131 = vld [vmem:[%s0 + $0x3a8] sm:$0xff]
  %v132 = vld [vmem:[%s0 + $0x3b0] sm:$0xff]
  %v133 = vld [vmem:[%s0 + $0x3b8] sm:$0xff]
  %v134 = vld [vmem:[%s0 + $0x3c0] sm:$0xff]
  %v135 = vld [vmem:[%s0 + $0x3c8] sm:$0xff]
  %v136 = vld [vmem:[%s0 + $0x3d0] sm:$0xff]
  %v137 = vld [vmem:[%s0 + $0x3d8] sm:$0xff]
  %v138 = vld [vmem:[%s0 + $0x3e0] sm:$0xff]
  %v139 = vld [vmem:[%s0 + $0x3e8] sm:$0xff]
  %v140 = vld [vmem:[%s0 + $0x3f0] sm:$0xff]
  %v141 = vld [vmem:[%s0 + $0x3f8] sm:$0xff]
  %v142 = vld [vmem:[%s1] sm:$0xff]
  %v143 = vld [vmem:[%s1 + $0x8] sm:$0xff]
  %v144 = vld [vmem:[%s1 + $0x10] sm:$0xff]
  %v145 = vld [vmem:[%s1 + $0x18] sm:$0xff]
  %v146 = vld [vmem:[%s2] sm:$0x1]
  %v148 = vperm.slane %v146, 0
  %vm150 = vcmask 261120
  %v152 = vsel %vm150, %v14, 0
  %v155 = vsel %vm150, %v15, 0
  %v158 = vsel %vm150, %v16, 0
  %v161 = vsel %vm150, %v17, 0
  %v164 = vsel %vm150, %v18, 0
  %v167 = vsel %vm150, %v19, 0
  %v170 = vsel %vm150, %v20, 0
  %v173 = vsel %vm150, %v21, 0
  %v176 = vsel %vm150, %v22, 0
  %v179 = vsel %vm150, %v23, 0
  %v182 = vsel %vm150, %v24, 0
  %v185 = vsel %vm150, %v25, 0
  %v188 = vsel %vm150, %v26, 0
  %v191 = vsel %vm150, %v27, 0
  %v194 = vsel %vm150, %v28, 0
  %v197 = vsel %vm150, %v29, 0
  %v200 = vsel %vm150, %v30, 0
  %v203 = vsel %vm150, %v31, 0
  %v206 = vsel %vm150, %v32, 0
  %v209 = vsel %vm150, %v33, 0
  %v212 = vsel %vm150, %v34, 0
  %v215 = vsel %vm150, %v35, 0
  %v218 = vsel %vm150, %v36, 0
  %v221 = vsel %vm150, %v37, 0
  %v224 = vsel %vm150, %v38, 0
  %v227 = vsel %vm150, %v39, 0
  %v230 = vsel %vm150, %v40, 0
  %v233 = vsel %vm150, %v41, 0
  %v236 = vsel %vm150, %v42, 0
  %v239 = vsel %vm150, %v43, 0
  %v242 = vsel %vm150, %v44, 0
  %v245 = vsel %vm150, %v45, 0
  %v248 = vsel %vm150, %v46, 0
  %v251 = vsel %vm150, %v47, 0
  %v254 = vsel %vm150, %v48, 0
  %v257 = vsel %vm150, %v49, 0
  %v260 = vsel %vm150, %v50, 0
  %v263 = vsel %vm150, %v51, 0
  %v266 = vsel %vm150, %v52, 0
  %v269 = vsel %vm150, %v53, 0
  %v272 = vsel %vm150, %v54, 0
  %v275 = vsel %vm150, %v55, 0
  %v278 = vsel %vm150, %v56, 0
  %v281 = vsel %vm150, %v57, 0
  %v284 = vsel %vm150, %v58, 0
  %v287 = vsel %vm150, %v59, 0
  %v290 = vsel %vm150, %v60, 0
  %v293 = vsel %vm150, %v61, 0
  %v296 = vsel %vm150, %v62, 0
  %v299 = vsel %vm150, %v63, 0
  %v302 = vsel %vm150, %v64, 0
  %v305 = vsel %vm150, %v65, 0
  %v308 = vsel %vm150, %v66, 0
  %v311 = vsel %vm150, %v67, 0
  %v314 = vsel %vm150, %v68, 0
  %v317 = vsel %vm150, %v69, 0
  %v320 = vsel %vm150, %v70, 0
  %v323 = vsel %vm150, %v71, 0
  %v326 = vsel %vm150, %v72, 0
  %v329 = vsel %vm150, %v73, 0
  %v332 = vsel %vm150, %v74, 0
  %v335 = vsel %vm150, %v75, 0
  %v338 = vsel %vm150, %v76, 0
  %v341 = vsel %vm150, %v77, 0
  %v344 = vsel %vm150, %v78, 0
  %v347 = vsel %vm150, %v79, 0
  %v350 = vsel %vm150, %v80, 0
  %v353 = vsel %vm150, %v81, 0
  %v356 = vsel %vm150, %v82, 0
  %v359 = vsel %vm150, %v83, 0
  %v362 = vsel %vm150, %v84, 0
  %v365 = vsel %vm150, %v85, 0
  %v368 = vsel %vm150, %v86, 0
  %v371 = vsel %vm150, %v87, 0
  %v374 = vsel %vm150, %v88, 0
  %v377 = vsel %vm150, %v89, 0
  %v380 = vsel %vm150, %v90, 0
  %v383 = vsel %vm150, %v91, 0
  %v386 = vsel %vm150, %v92, 0
  %v389 = vsel %vm150, %v93, 0
  %v392 = vsel %vm150, %v94, 0
  %v395 = vsel %vm150, %v95, 0
  %v398 = vsel %vm150, %v96, 0
  %v401 = vsel %vm150, %v97, 0
  %v404 = vsel %vm150, %v98, 0
  %v407 = vsel %vm150, %v99, 0
  %v410 = vsel %vm150, %v100, 0
  %v413 = vsel %vm150, %v101, 0
  %v416 = vsel %vm150, %v102, 0
  %v419 = vsel %vm150, %v103, 0
  %v422 = vsel %vm150, %v104, 0
  %v425 = vsel %vm150, %v105, 0
  %v428 = vsel %vm150, %v106, 0
  %v431 = vsel %vm150, %v107, 0
  %v434 = vsel %vm150, %v108, 0
  %v437 = vsel %vm150, %v109, 0
  %v440 = vsel %vm150, %v110, 0
  %v443 = vsel %vm150, %v111, 0
  %v446 = vsel %vm150, %v112, 0
  %v449 = vsel %vm150, %v113, 0
  %v452 = vsel %vm150, %v114, 0
  %v455 = vsel %vm150, %v115, 0
  %v458 = vsel %vm150, %v116, 0
  %v461 = vsel %vm150, %v117, 0
  %v464 = vsel %vm150, %v118, 0
  %v467 = vsel %vm150, %v119, 0
  %v470 = vsel %vm150, %v120, 0
  %v473 = vsel %vm150, %v121, 0
  %v476 = vsel %vm150, %v122, 0
  %v479 = vsel %vm150, %v123, 0
  %v482 = vsel %vm150, %v124, 0
  %v485 = vsel %vm150, %v125, 0
  %v488 = vsel %vm150, %v126, 0
  %v491 = vsel %vm150, %v127, 0
  %v494 = vsel %vm150, %v128, 0
  %v497 = vsel %vm150, %v129, 0
  %v500 = vsel %vm150, %v130, 0
  %v503 = vsel %vm150, %v131, 0
  %v506 = vsel %vm150, %v132, 0
  %v509 = vsel %vm150, %v133, 0
  %v512 = vsel %vm150, %v134, 0
  %v515 = vsel %vm150, %v135, 0
  %v518 = vsel %vm150, %v136, 0
  %v521 = vsel %vm150, %v137, 0
  %v524 = vsel %vm150, %v138, 0
  %v527 = vsel %vm150, %v139, 0
  %v530 = vsel %vm150, %v140, 0
  %v533 = vsel %vm150, %v141, 0
  %535 = vmatpush.msra.mxu0 0.0
  %536 = vmatpush.msra.mxu0 0.0
  %537 = vmatpush.msra.mxu0 0.0
  %538 = vmatpush.msra.mxu0 0.0
  %539 = vmatpush.msra.mxu0 0.0
  %540 = vmatpush.msra.mxu0 0.0
  %541 = vmatpush.msra.mxu0 0.0
  %542 = vmatpush.msra.mxu0 0.0
  %543 = vmatpush.msra.mxu0 0.0
  %544 = vmatpush.msra.mxu0 0.0
  %545 = vmatpush.msra.mxu0 0.0
  %546 = vmatpush.msra.mxu0 0.0
  %547 = vmatpush.msra.mxu0 %v145
  %548 = vmatpush.msra.mxu0 %v144
  %549 = vmatpush.msra.mxu0 %v143
  %550 = vmatpush.msra.mxu0 %v142
  %551 = vmatmul.f32.gmra.mxu0 %v152
  %v552 = vpop.f32.mrf.mxu0
  %v553 = vadd.f32 %v148, %v552
  %554 = vmatmul.f32.gmra.mxu0 %v155
  %v555 = vpop.f32.mrf.mxu0
  %v556 = vadd.f32 %v148, %v555
  %557 = vmatmul.f32.gmra.mxu0 %v158
  %v558 = vpop.f32.mrf.mxu0
  %v559 = vadd.f32 %v148, %v558
  %560 = vmatmul.f32.gmra.mxu0 %v161
  %v561 = vpop.f32.mrf.mxu0
  %v562 = vadd.f32 %v148, %v561
  %563 = vmatmul.f32.gmra.mxu0 %v164
  %v564 = vpop.f32.mrf.mxu0
  %v565 = vadd.f32 %v148, %v564
  %566 = vmatmul.f32.gmra.mxu0 %v167
  %v567 = vpop.f32.mrf.mxu0
  %v568 = vadd.f32 %v148, %v567
  %569 = vmatmul.f32.gmra.mxu0 %v170
  %v570 = vpop.f32.mrf.mxu0
  %v571 = vadd.f32 %v148, %v570
  %572 = vmatmul.f32.gmra.mxu0 %v173
  %v573 = vpop.f32.mrf.mxu0
  %v574 = vadd.f32 %v148, %v573
  %575 = vmatmul.f32.gmra.mxu0 %v176
  %v576 = vpop.f32.mrf.mxu0
  %v577 = vadd.f32 %v148, %v576
  %578 = vmatmul.f32.gmra.mxu0 %v179
  %v579 = vpop.f32.mrf.mxu0
  %v580 = vadd.f32 %v148, %v579
  %581 = vmatmul.f32.gmra.mxu0 %v182
  %v582 = vpop.f32.mrf.mxu0
  %v583 = vadd.f32 %v148, %v582
  %584 = vmatmul.f32.gmra.mxu0 %v185
  %v585 = vpop.f32.mrf.mxu0
  %v586 = vadd.f32 %v148, %v585
  %587 = vmatmul.f32.gmra.mxu0 %v188
  %v588 = vpop.f32.mrf.mxu0
  %v589 = vadd.f32 %v148, %v588
  %590 = vmatmul.f32.gmra.mxu0 %v191
  %v591 = vpop.f32.mrf.mxu0
  %v592 = vadd.f32 %v148, %v591
  %593 = vmatmul.f32.gmra.mxu0 %v194
  %v594 = vpop.f32.mrf.mxu0
  %v595 = vadd.f32 %v148, %v594
  %596 = vmatmul.f32.gmra.mxu0 %v197
  %v597 = vpop.f32.mrf.mxu0
  %v598 = vadd.f32 %v148, %v597
  %599 = vmatmul.f32.gmra.mxu0 %v200
  %v600 = vpop.f32.mrf.mxu0
  %v601 = vadd.f32 %v148, %v600
  %602 = vmatmul.f32.gmra.mxu0 %v203
  %v603 = vpop.f32.mrf.mxu0
  %v604 = vadd.f32 %v148, %v603
  %605 = vmatmul.f32.gmra.mxu0 %v206
  %v606 = vpop.f32.mrf.mxu0
  %v607 = vadd.f32 %v148, %v606
  %608 = vmatmul.f32.gmra.mxu0 %v209
  %v609 = vpop.f32.mrf.mxu0
  %v610 = vadd.f32 %v148, %v609
  %611 = vmatmul.f32.gmra.mxu0 %v212
  %v612 = vpop.f32.mrf.mxu0
  %v613 = vadd.f32 %v148, %v612
  %614 = vmatmul.f32.gmra.mxu0 %v215
  %v615 = vpop.f32.mrf.mxu0
  %v616 = vadd.f32 %v148, %v615
  %617 = vmatmul.f32.gmra.mxu0 %v218
  %v618 = vpop.f32.mrf.mxu0
  %v619 = vadd.f32 %v148, %v618
  %620 = vmatmul.f32.gmra.mxu0 %v221
  %v621 = vpop.f32.mrf.mxu0
  %v622 = vadd.f32 %v148, %v621
  %623 = vmatmul.f32.gmra.mxu0 %v224
  %v624 = vpop.f32.mrf.mxu0
  %v625 = vadd.f32 %v148, %v624
  %626 = vmatmul.f32.gmra.mxu0 %v227
  %v627 = vpop.f32.mrf.mxu0
  %v628 = vadd.f32 %v148, %v627
  %629 = vmatmul.f32.gmra.mxu0 %v230
  %v630 = vpop.f32.mrf.mxu0
  %v631 = vadd.f32 %v148, %v630
  %632 = vmatmul.f32.gmra.mxu0 %v233
  %v633 = vpop.f32.mrf.mxu0
  %v634 = vadd.f32 %v148, %v633
  %635 = vmatmul.f32.gmra.mxu0 %v236
  %v636 = vpop.f32.mrf.mxu0
  %v637 = vadd.f32 %v148, %v636
  %638 = vmatmul.f32.gmra.mxu0 %v239
  %v639 = vpop.f32.mrf.mxu0
  %v640 = vadd.f32 %v148, %v639
  %641 = vmatmul.f32.gmra.mxu0 %v242
  %v642 = vpop.f32.mrf.mxu0
  %v643 = vadd.f32 %v148, %v642
  %644 = vmatmul.f32.gmra.mxu0 %v245
  %v645 = vpop.f32.mrf.mxu0
  %v646 = vadd.f32 %v148, %v645
  %647 = vmatmul.f32.gmra.mxu0 %v248
  %v648 = vpop.f32.mrf.mxu0
  %v649 = vadd.f32 %v148, %v648
  %650 = vmatmul.f32.gmra.mxu0 %v251
  %v651 = vpop.f32.mrf.mxu0
  %v652 = vadd.f32 %v148, %v651
  %653 = vmatmul.f32.gmra.mxu0 %v254
  %v654 = vpop.f32.mrf.mxu0
  %v655 = vadd.f32 %v148, %v654
  %656 = vmatmul.f32.gmra.mxu0 %v257
  %v657 = vpop.f32.mrf.mxu0
  %v658 = vadd.f32 %v148, %v657
  %659 = vmatmul.f32.gmra.mxu0 %v260
  %v660 = vpop.f32.mrf.mxu0
  %v661 = vadd.f32 %v148, %v660
  %662 = vmatmul.f32.gmra.mxu0 %v263
  %v663 = vpop.f32.mrf.mxu0
  %v664 = vadd.f32 %v148, %v663
  %665 = vmatmul.f32.gmra.mxu0 %v266
  %v666 = vpop.f32.mrf.mxu0
  %v667 = vadd.f32 %v148, %v666
  %668 = vmatmul.f32.gmra.mxu0 %v269
  %v669 = vpop.f32.mrf.mxu0
  %v670 = vadd.f32 %v148, %v669
  %671 = vmatmul.f32.gmra.mxu0 %v272
  %v672 = vpop.f32.mrf.mxu0
  %v673 = vadd.f32 %v148, %v672
  %674 = vmatmul.f32.gmra.mxu0 %v275
  %v675 = vpop.f32.mrf.mxu0
  %v676 = vadd.f32 %v148, %v675
  %677 = vmatmul.f32.gmra.mxu0 %v278
  %v678 = vpop.f32.mrf.mxu0
  %v679 = vadd.f32 %v148, %v678
  %680 = vmatmul.f32.gmra.mxu0 %v281
  %v681 = vpop.f32.mrf.mxu0
  %v682 = vadd.f32 %v148, %v681
  %683 = vmatmul.f32.gmra.mxu0 %v284
  %v684 = vpop.f32.mrf.mxu0
  %v685 = vadd.f32 %v148, %v684
  %686 = vmatmul.f32.gmra.mxu0 %v287
  %v687 = vpop.f32.mrf.mxu0
  %v688 = vadd.f32 %v148, %v687
  %689 = vmatmul.f32.gmra.mxu0 %v290
  %v690 = vpop.f32.mrf.mxu0
  %v691 = vadd.f32 %v148, %v690
  %692 = vmatmul.f32.gmra.mxu0 %v293
  %v693 = vpop.f32.mrf.mxu0
  %v694 = vadd.f32 %v148, %v693
  %695 = vmatmul.f32.gmra.mxu0 %v296
  %v696 = vpop.f32.mrf.mxu0
  %v697 = vadd.f32 %v148, %v696
  %698 = vmatmul.f32.gmra.mxu0 %v299
  %v699 = vpop.f32.mrf.mxu0
  %v700 = vadd.f32 %v148, %v699
  %701 = vmatmul.f32.gmra.mxu0 %v302
  %v702 = vpop.f32.mrf.mxu0
  %v703 = vadd.f32 %v148, %v702
  %704 = vmatmul.f32.gmra.mxu0 %v305
  %v705 = vpop.f32.mrf.mxu0
  %v706 = vadd.f32 %v148, %v705
  %707 = vmatmul.f32.gmra.mxu0 %v308
  %v708 = vpop.f32.mrf.mxu0
  %v709 = vadd.f32 %v148, %v708
  %710 = vmatmul.f32.gmra.mxu0 %v311
  %v711 = vpop.f32.mrf.mxu0
  %v712 = vadd.f32 %v148, %v711
  %713 = vmatmul.f32.gmra.mxu0 %v314
  %v714 = vpop.f32.mrf.mxu0
  %v715 = vadd.f32 %v148, %v714
  %716 = vmatmul.f32.gmra.mxu0 %v317
  %v717 = vpop.f32.mrf.mxu0
  %v718 = vadd.f32 %v148, %v717
  %719 = vmatmul.f32.gmra.mxu0 %v320
  %v720 = vpop.f32.mrf.mxu0
  %v721 = vadd.f32 %v148, %v720
  %722 = vmatmul.f32.gmra.mxu0 %v323
  %v723 = vpop.f32.mrf.mxu0
  %v724 = vadd.f32 %v148, %v723
  %725 = vmatmul.f32.gmra.mxu0 %v326
  %v726 = vpop.f32.mrf.mxu0
  %v727 = vadd.f32 %v148, %v726
  %728 = vmatmul.f32.gmra.mxu0 %v329
  %v729 = vpop.f32.mrf.mxu0
  %v730 = vadd.f32 %v148, %v729
  %731 = vmatmul.f32.gmra.mxu0 %v332
  %v732 = vpop.f32.mrf.mxu0
  %v733 = vadd.f32 %v148, %v732
  %734 = vmatmul.f32.gmra.mxu0 %v335
  %v735 = vpop.f32.mrf.mxu0
  %v736 = vadd.f32 %v148, %v735
  %737 = vmatmul.f32.gmra.mxu0 %v338
  %v738 = vpop.f32.mrf.mxu0
  %v739 = vadd.f32 %v148, %v738
  %740 = vmatmul.f32.gmra.mxu0 %v341
  %v741 = vpop.f32.mrf.mxu0
  %v742 = vadd.f32 %v148, %v741
  %743 = vmatmul.f32.gmra.mxu0 %v344
  %v744 = vpop.f32.mrf.mxu0
  %v745 = vadd.f32 %v148, %v744
  %746 = vmatmul.f32.gmra.mxu0 %v347
  %v747 = vpop.f32.mrf.mxu0
  %v748 = vadd.f32 %v148, %v747
  %749 = vmatmul.f32.gmra.mxu0 %v350
  %v750 = vpop.f32.mrf.mxu0
  %v751 = vadd.f32 %v148, %v750
  %752 = vmatmul.f32.gmra.mxu0 %v353
  %v753 = vpop.f32.mrf.mxu0
  %v754 = vadd.f32 %v148, %v753
  %755 = vmatmul.f32.gmra.mxu0 %v356
  %v756 = vpop.f32.mrf.mxu0
  %v757 = vadd.f32 %v148, %v756
  %758 = vmatmul.f32.gmra.mxu0 %v359
  %v759 = vpop.f32.mrf.mxu0
  %v760 = vadd.f32 %v148, %v759
  %761 = vmatmul.f32.gmra.mxu0 %v362
  %v762 = vpop.f32.mrf.mxu0
  %v763 = vadd.f32 %v148, %v762
  %764 = vmatmul.f32.gmra.mxu0 %v365
  %v765 = vpop.f32.mrf.mxu0
  %v766 = vadd.f32 %v148, %v765
  %767 = vmatmul.f32.gmra.mxu0 %v368
  %v768 = vpop.f32.mrf.mxu0
  %v769 = vadd.f32 %v148, %v768
  %770 = vmatmul.f32.gmra.mxu0 %v371
  %v771 = vpop.f32.mrf.mxu0
  %v772 = vadd.f32 %v148, %v771
  %773 = vmatmul.f32.gmra.mxu0 %v374
  %v774 = vpop.f32.mrf.mxu0
  %v775 = vadd.f32 %v148, %v774
  %776 = vmatmul.f32.gmra.mxu0 %v377
  %v777 = vpop.f32.mrf.mxu0
  %v778 = vadd.f32 %v148, %v777
  %779 = vmatmul.f32.gmra.mxu0 %v380
  %v780 = vpop.f32.mrf.mxu0
  %v781 = vadd.f32 %v148, %v780
  %782 = vmatmul.f32.gmra.mxu0 %v383
  %v783 = vpop.f32.mrf.mxu0
  %v784 = vadd.f32 %v148, %v783
  %785 = vmatmul.f32.gmra.mxu0 %v386
  %v786 = vpop.f32.mrf.mxu0
  %v787 = vadd.f32 %v148, %v786
  %788 = vmatmul.f32.gmra.mxu0 %v389
  %v789 = vpop.f32.mrf.mxu0
  %v790 = vadd.f32 %v148, %v789
  %791 = vmatmul.f32.gmra.mxu0 %v392
  %v792 = vpop.f32.mrf.mxu0
  %v793 = vadd.f32 %v148, %v792
  %794 = vmatmul.f32.gmra.mxu0 %v395
  %v795 = vpop.f32.mrf.mxu0
  %v796 = vadd.f32 %v148, %v795
  %797 = vmatmul.f32.gmra.mxu0 %v398
  %v798 = vpop.f32.mrf.mxu0
  %v799 = vadd.f32 %v148, %v798
  %800 = vmatmul.f32.gmra.mxu0 %v401
  %v801 = vpop.f32.mrf.mxu0
  %v802 = vadd.f32 %v148, %v801
  %803 = vmatmul.f32.gmra.mxu0 %v404
  %v804 = vpop.f32.mrf.mxu0
  %v805 = vadd.f32 %v148, %v804
  %806 = vmatmul.f32.gmra.mxu0 %v407
  %v807 = vpop.f32.mrf.mxu0
  %v808 = vadd.f32 %v148, %v807
  %809 = vmatmul.f32.gmra.mxu0 %v410
  %v810 = vpop.f32.mrf.mxu0
  %v811 = vadd.f32 %v148, %v810
  %812 = vmatmul.f32.gmra.mxu0 %v413
  %v813 = vpop.f32.mrf.mxu0
  %v814 = vadd.f32 %v148, %v813
  %815 = vmatmul.f32.gmra.mxu0 %v416
  %v816 = vpop.f32.mrf.mxu0
  %v817 = vadd.f32 %v148, %v816
  %818 = vmatmul.f32.gmra.mxu0 %v419
  %v819 = vpop.f32.mrf.mxu0
  %v820 = vadd.f32 %v148, %v819
  %821 = vmatmul.f32.gmra.mxu0 %v422
  %v822 = vpop.f32.mrf.mxu0
  %v823 = vadd.f32 %v148, %v822
  %824 = vmatmul.f32.gmra.mxu0 %v425
  %v825 = vpop.f32.mrf.mxu0
  %v826 = vadd.f32 %v148, %v825
  %827 = vmatmul.f32.gmra.mxu0 %v428
  %v828 = vpop.f32.mrf.mxu0
  %v829 = vadd.f32 %v148, %v828
  %830 = vmatmul.f32.gmra.mxu0 %v431
  %v831 = vpop.f32.mrf.mxu0
  %v832 = vadd.f32 %v148, %v831
  %833 = vmatmul.f32.gmra.mxu0 %v434
  %v834 = vpop.f32.mrf.mxu0
  %v835 = vadd.f32 %v148, %v834
  %836 = vmatmul.f32.gmra.mxu0 %v437
  %v837 = vpop.f32.mrf.mxu0
  %v838 = vadd.f32 %v148, %v837
  %839 = vmatmul.f32.gmra.mxu0 %v440
  %v840 = vpop.f32.mrf.mxu0
  %v841 = vadd.f32 %v148, %v840
  %842 = vmatmul.f32.gmra.mxu0 %v443
  %v843 = vpop.f32.mrf.mxu0
  %v844 = vadd.f32 %v148, %v843
  %845 = vmatmul.f32.gmra.mxu0 %v446
  %v846 = vpop.f32.mrf.mxu0
  %v847 = vadd.f32 %v148, %v846
  %848 = vmatmul.f32.gmra.mxu0 %v449
  %v849 = vpop.f32.mrf.mxu0
  %v850 = vadd.f32 %v148, %v849
  %851 = vmatmul.f32.gmra.mxu0 %v452
  %v852 = vpop.f32.mrf.mxu0
  %v853 = vadd.f32 %v148, %v852
  %854 = vmatmul.f32.gmra.mxu0 %v455
  %v855 = vpop.f32.mrf.mxu0
  %v856 = vadd.f32 %v148, %v855
  %857 = vmatmul.f32.gmra.mxu0 %v458
  %v858 = vpop.f32.mrf.mxu0
  %v859 = vadd.f32 %v148, %v858
  %860 = vmatmul.f32.gmra.mxu0 %v461
  %v861 = vpop.f32.mrf.mxu0
  %v862 = vadd.f32 %v148, %v861
  %863 = vmatmul.f32.gmra.mxu0 %v464
  %v864 = vpop.f32.mrf.mxu0
  %v865 = vadd.f32 %v148, %v864
  %866 = vmatmul.f32.gmra.mxu0 %v467
  %v867 = vpop.f32.mrf.mxu0
  %v868 = vadd.f32 %v148, %v867
  %869 = vmatmul.f32.gmra.mxu0 %v470
  %v870 = vpop.f32.mrf.mxu0
  %v871 = vadd.f32 %v148, %v870
  %872 = vmatmul.f32.gmra.mxu0 %v473
  %v873 = vpop.f32.mrf.mxu0
  %v874 = vadd.f32 %v148, %v873
  %875 = vmatmul.f32.gmra.mxu0 %v476
  %v876 = vpop.f32.mrf.mxu0
  %v877 = vadd.f32 %v148, %v876
  %878 = vmatmul.f32.gmra.mxu0 %v479
  %v879 = vpop.f32.mrf.mxu0
  %v880 = vadd.f32 %v148, %v879
  %881 = vmatmul.f32.gmra.mxu0 %v482
  %v882 = vpop.f32.mrf.mxu0
  %v883 = vadd.f32 %v148, %v882
  %884 = vmatmul.f32.gmra.mxu0 %v485
  %v885 = vpop.f32.mrf.mxu0
  %v886 = vadd.f32 %v148, %v885
  %887 = vmatmul.f32.gmra.mxu0 %v488
  %v888 = vpop.f32.mrf.mxu0
  %v889 = vadd.f32 %v148, %v888
  %890 = vmatmul.f32.gmra.mxu0 %v491
  %v891 = vpop.f32.mrf.mxu0
  %v892 = vadd.f32 %v148, %v891
  %893 = vmatmul.f32.gmra.mxu0 %v494
  %v894 = vpop.f32.mrf.mxu0
  %v895 = vadd.f32 %v148, %v894
  %896 = vmatmul.f32.gmra.mxu0 %v497
  %v897 = vpop.f32.mrf.mxu0
  %v898 = vadd.f32 %v148, %v897
  %899 = vmatmul.f32.gmra.mxu0 %v500
  %v900 = vpop.f32.mrf.mxu0
  %v901 = vadd.f32 %v148, %v900
  %902 = vmatmul.f32.gmra.mxu0 %v503
  %v903 = vpop.f32.mrf.mxu0
  %v904 = vadd.f32 %v148, %v903
  %905 = vmatmul.f32.gmra.mxu0 %v506
  %v906 = vpop.f32.mrf.mxu0
  %v907 = vadd.f32 %v148, %v906
  %908 = vmatmul.f32.gmra.mxu0 %v509
  %v909 = vpop.f32.mrf.mxu0
  %v910 = vadd.f32 %v148, %v909
  %911 = vmatmul.f32.gmra.mxu0 %v512
  %v912 = vpop.f32.mrf.mxu0
  %v913 = vadd.f32 %v148, %v912
  %914 = vmatmul.f32.gmra.mxu0 %v515
  %v915 = vpop.f32.mrf.mxu0
  %v916 = vadd.f32 %v148, %v915
  %917 = vmatmul.f32.gmra.mxu0 %v518
  %v918 = vpop.f32.mrf.mxu0
  %v919 = vadd.f32 %v148, %v918
  %920 = vmatmul.f32.gmra.mxu0 %v521
  %v921 = vpop.f32.mrf.mxu0
  %v922 = vadd.f32 %v148, %v921
  %923 = vmatmul.f32.gmra.mxu0 %v524
  %v924 = vpop.f32.mrf.mxu0
  %v925 = vadd.f32 %v148, %v924
  %926 = vmatmul.f32.gmra.mxu0 %v527
  %v927 = vpop.f32.mrf.mxu0
  %v928 = vadd.f32 %v148, %v927
  %929 = vmatmul.f32.gmra.mxu0 %v530
  %v930 = vpop.f32.mrf.mxu0
  %v931 = vadd.f32 %v148, %v930
  %932 = vmatmul.f32.gmra.mxu0 %v533
  %v933 = vpop.f32.mrf.mxu0
  %v934 = vadd.f32 %v148, %v933
  %935 = vdwg.mxu0
  %v936 = vmax.f32 %v553, 0.0
  %v937 = vmax.f32 %v556, 0.0
  %v938 = vmax.f32 %v559, 0.0
  %v939 = vmax.f32 %v562, 0.0
  %v940 = vmax.f32 %v565, 0.0
  %v941 = vmax.f32 %v568, 0.0
  %v942 = vmax.f32 %v571, 0.0
  %v943 = vmax.f32 %v574, 0.0
  %v944 = vmax.f32 %v577, 0.0
  %v945 = vmax.f32 %v580, 0.0
  %v946 = vmax.f32 %v583, 0.0
  %v947 = vmax.f32 %v586, 0.0
  %v948 = vmax.f32 %v589, 0.0
  %v949 = vmax.f32 %v592, 0.0
  %v950 = vmax.f32 %v595, 0.0
  %v951 = vmax.f32 %v598, 0.0
  %v952 = vmax.f32 %v601, 0.0
  %v953 = vmax.f32 %v604, 0.0
  %v954 = vmax.f32 %v607, 0.0
  %v955 = vmax.f32 %v610, 0.0
  %v956 = vmax.f32 %v613, 0.0
  %v957 = vmax.f32 %v616, 0.0
  %v958 = vmax.f32 %v619, 0.0
  %v959 = vmax.f32 %v622, 0.0
  %v960 = vmax.f32 %v625, 0.0
  %v961 = vmax.f32 %v628, 0.0
  %v962 = vmax.f32 %v631, 0.0
  %v963 = vmax.f32 %v634, 0.0
  %v964 = vmax.f32 %v637, 0.0
  %v965 = vmax.f32 %v640, 0.0
  %v966 = vmax.f32 %v643, 0.0
  %v967 = vmax.f32 %v646, 0.0
  %v968 = vmax.f32 %v649, 0.0
  %v969 = vmax.f32 %v652, 0.0
  %v970 = vmax.f32 %v655, 0.0
  %v971 = vmax.f32 %v658, 0.0
  %v972 = vmax.f32 %v661, 0.0
  %v973 = vmax.f32 %v664, 0.0
  %v974 = vmax.f32 %v667, 0.0
  %v975 = vmax.f32 %v670, 0.0
  %v976 = vmax.f32 %v673, 0.0
  %v977 = vmax.f32 %v676, 0.0
  %v978 = vmax.f32 %v679, 0.0
  %v979 = vmax.f32 %v682, 0.0
  %v980 = vmax.f32 %v685, 0.0
  %v981 = vmax.f32 %v688, 0.0
  %v982 = vmax.f32 %v691, 0.0
  %v983 = vmax.f32 %v694, 0.0
  %v984 = vmax.f32 %v697, 0.0
  %v985 = vmax.f32 %v700, 0.0
  %v986 = vmax.f32 %v703, 0.0
  %v987 = vmax.f32 %v706, 0.0
  %v988 = vmax.f32 %v709, 0.0
  %v989 = vmax.f32 %v712, 0.0
  %v990 = vmax.f32 %v715, 0.0
  %v991 = vmax.f32 %v718, 0.0
  %v992 = vmax.f32 %v721, 0.0
  %v993 = vmax.f32 %v724, 0.0
  %v994 = vmax.f32 %v727, 0.0
  %v995 = vmax.f32 %v730, 0.0
  %v996 = vmax.f32 %v733, 0.0
  %v997 = vmax.f32 %v736, 0.0
  %v998 = vmax.f32 %v739, 0.0
  %v999 = vmax.f32 %v742, 0.0
  %v1000 = vmax.f32 %v745, 0.0
  %v1001 = vmax.f32 %v748, 0.0
  %v1002 = vmax.f32 %v751, 0.0
  %v1003 = vmax.f32 %v754, 0.0
  %v1004 = vmax.f32 %v757, 0.0
  %v1005 = vmax.f32 %v760, 0.0
  %v1006 = vmax.f32 %v763, 0.0
  %v1007 = vmax.f32 %v766, 0.0
  %v1008 = vmax.f32 %v769, 0.0
  %v1009 = vmax.f32 %v772, 0.0
  %v1010 = vmax.f32 %v775, 0.0
  %v1011 = vmax.f32 %v778, 0.0
  %v1012 = vmax.f32 %v781, 0.0
  %v1013 = vmax.f32 %v784, 0.0
  %v1014 = vmax.f32 %v787, 0.0
  %v1015 = vmax.f32 %v790, 0.0
  %v1016 = vmax.f32 %v793, 0.0
  %v1017 = vmax.f32 %v796, 0.0
  %v1018 = vmax.f32 %v799, 0.0
  %v1019 = vmax.f32 %v802, 0.0
  %v1020 = vmax.f32 %v805, 0.0
  %v1021 = vmax.f32 %v808, 0.0
  %v1022 = vmax.f32 %v811, 0.0
  %v1023 = vmax.f32 %v814, 0.0
  %v1024 = vmax.f32 %v817, 0.0
  %v1025 = vmax.f32 %v820, 0.0
  %v1026 = vmax.f32 %v823, 0.0
  %v1027 = vmax.f32 %v826, 0.0
  %v1028 = vmax.f32 %v829, 0.0
  %v1029 = vmax.f32 %v832, 0.0
  %v1030 = vmax.f32 %v835, 0.0
  %v1031 = vmax.f32 %v838, 0.0
  %v1032 = vmax.f32 %v841, 0.0
  %v1033 = vmax.f32 %v844, 0.0
  %v1034 = vmax.f32 %v847, 0.0
  %v1035 = vmax.f32 %v850, 0.0
  %v1036 = vmax.f32 %v853, 0.0
  %v1037 = vmax.f32 %v856, 0.0
  %v1038 = vmax.f32 %v859, 0.0
  %v1039 = vmax.f32 %v862, 0.0
  %v1040 = vmax.f32 %v865, 0.0
  %v1041 = vmax.f32 %v868, 0.0
  %v1042 = vmax.f32 %v871, 0.0
  %v1043 = vmax.f32 %v874, 0.0
  %v1044 = vmax.f32 %v877, 0.0
  %v1045 = vmax.f32 %v880, 0.0
  %v1046 = vmax.f32 %v883, 0.0
  %v1047 = vmax.f32 %v886, 0.0
  %v1048 = vmax.f32 %v889, 0.0
  %v1049 = vmax.f32 %v892, 0.0
  %v1050 = vmax.f32 %v895, 0.0
  %v1051 = vmax.f32 %v898, 0.0
  %v1052 = vmax.f32 %v901, 0.0
  %v1053 = vmax.f32 %v904, 0.0
  %v1054 = vmax.f32 %v907, 0.0
  %v1055 = vmax.f32 %v910, 0.0
  %v1056 = vmax.f32 %v913, 0.0
  %v1057 = vmax.f32 %v916, 0.0
  %v1058 = vmax.f32 %v919, 0.0
  %v1059 = vmax.f32 %v922, 0.0
  %v1060 = vmax.f32 %v925, 0.0
  %v1061 = vmax.f32 %v928, 0.0
  %v1062 = vmax.f32 %v931, 0.0
  %v1063 = vmax.f32 %v934, 0.0
  %vm1064 = vcmask 64512
  %1065 = vst.msk [vmem:[%s3] sm:$0xff] %vm1064, %v936
  %1066 = vst.msk [vmem:[%s3 + $0x8] sm:$0xff] %vm1064, %v937
  %1067 = vst.msk [vmem:[%s3 + $0x10] sm:$0xff] %vm1064, %v938
  %1068 = vst.msk [vmem:[%s3 + $0x18] sm:$0xff] %vm1064, %v939
  %1069 = vst.msk [vmem:[%s3 + $0x20] sm:$0xff] %vm1064, %v940
  %1070 = vst.msk [vmem:[%s3 + $0x28] sm:$0xff] %vm1064, %v941
  %1071 = vst.msk [vmem:[%s3 + $0x30] sm:$0xff] %vm1064, %v942
  %1072 = vst.msk [vmem:[%s3 + $0x38] sm:$0xff] %vm1064, %v943
  %1073 = vst.msk [vmem:[%s3 + $0x40] sm:$0xff] %vm1064, %v944
  %1074 = vst.msk [vmem:[%s3 + $0x48] sm:$0xff] %vm1064, %v945
  %1075 = vst.msk [vmem:[%s3 + $0x50] sm:$0xff] %vm1064, %v946
  %1076 = vst.msk [vmem:[%s3 + $0x58] sm:$0xff] %vm1064, %v947
  %1077 = vst.msk [vmem:[%s3 + $0x60] sm:$0xff] %vm1064, %v948
  %1078 = vst.msk [vmem:[%s3 + $0x68] sm:$0xff] %vm1064, %v949
  %1079 = vst.msk [vmem:[%s3 + $0x70] sm:$0xff] %vm1064, %v950
  %1080 = vst.msk [vmem:[%s3 + $0x78] sm:$0xff] %vm1064, %v951
  %1081 = vst.msk [vmem:[%s3 + $0x80] sm:$0xff] %vm1064, %v952
  %1082 = vst.msk [vmem:[%s3 + $0x88] sm:$0xff] %vm1064, %v953
  %1083 = vst.msk [vmem:[%s3 + $0x90] sm:$0xff] %vm1064, %v954
  %1084 = vst.msk [vmem:[%s3 + $0x98] sm:$0xff] %vm1064, %v955
  %1085 = vst.msk [vmem:[%s3 + $0xa0] sm:$0xff] %vm1064, %v956
  %1086 = vst.msk [vmem:[%s3 + $0xa8] sm:$0xff] %vm1064, %v957
  %1087 = vst.msk [vmem:[%s3 + $0xb0] sm:$0xff] %vm1064, %v958
  %1088 = vst.msk [vmem:[%s3 + $0xb8] sm:$0xff] %vm1064, %v959
  %1089 = vst.msk [vmem:[%s3 + $0xc0] sm:$0xff] %vm1064, %v960
  %1090 = vst.msk [vmem:[%s3 + $0xc8] sm:$0xff] %vm1064, %v961
  %1091 = vst.msk [vmem:[%s3 + $0xd0] sm:$0xff] %vm1064, %v962
  %1092 = vst.msk [vmem:[%s3 + $0xd8] sm:$0xff] %vm1064, %v963
  %1093 = vst.msk [vmem:[%s3 + $0xe0] sm:$0xff] %vm1064, %v964
  %1094 = vst.msk [vmem:[%s3 + $0xe8] sm:$0xff] %vm1064, %v965
  %1095 = vst.msk [vmem:[%s3 + $0xf0] sm:$0xff] %vm1064, %v966
  %1096 = vst.msk [vmem:[%s3 + $0xf8] sm:$0xff] %vm1064, %v967
  %1097 = vst.msk [vmem:[%s3 + $0x100] sm:$0xff] %vm1064, %v968
  %1098 = vst.msk [vmem:[%s3 + $0x108] sm:$0xff] %vm1064, %v969
  %1099 = vst.msk [vmem:[%s3 + $0x110] sm:$0xff] %vm1064, %v970
  %1100 = vst.msk [vmem:[%s3 + $0x118] sm:$0xff] %vm1064, %v971
  %1101 = vst.msk [vmem:[%s3 + $0x120] sm:$0xff] %vm1064, %v972
  %1102 = vst.msk [vmem:[%s3 + $0x128] sm:$0xff] %vm1064, %v973
  %1103 = vst.msk [vmem:[%s3 + $0x130] sm:$0xff] %vm1064, %v974
  %1104 = vst.msk [vmem:[%s3 + $0x138] sm:$0xff] %vm1064, %v975
  %1105 = vst.msk [vmem:[%s3 + $0x140] sm:$0xff] %vm1064, %v976
  %1106 = vst.msk [vmem:[%s3 + $0x148] sm:$0xff] %vm1064, %v977
  %1107 = vst.msk [vmem:[%s3 + $0x150] sm:$0xff] %vm1064, %v978
  %1108 = vst.msk [vmem:[%s3 + $0x158] sm:$0xff] %vm1064, %v979
  %1109 = vst.msk [vmem:[%s3 + $0x160] sm:$0xff] %vm1064, %v980
  %1110 = vst.msk [vmem:[%s3 + $0x168] sm:$0xff] %vm1064, %v981
  %1111 = vst.msk [vmem:[%s3 + $0x170] sm:$0xff] %vm1064, %v982
  %1112 = vst.msk [vmem:[%s3 + $0x178] sm:$0xff] %vm1064, %v983
  %1113 = vst.msk [vmem:[%s3 + $0x180] sm:$0xff] %vm1064, %v984
  %1114 = vst.msk [vmem:[%s3 + $0x188] sm:$0xff] %vm1064, %v985
  %1115 = vst.msk [vmem:[%s3 + $0x190] sm:$0xff] %vm1064, %v986
  %1116 = vst.msk [vmem:[%s3 + $0x198] sm:$0xff] %vm1064, %v987
  %1117 = vst.msk [vmem:[%s3 + $0x1a0] sm:$0xff] %vm1064, %v988
  %1118 = vst.msk [vmem:[%s3 + $0x1a8] sm:$0xff] %vm1064, %v989
  %1119 = vst.msk [vmem:[%s3 + $0x1b0] sm:$0xff] %vm1064, %v990
  %1120 = vst.msk [vmem:[%s3 + $0x1b8] sm:$0xff] %vm1064, %v991
  %1121 = vst.msk [vmem:[%s3 + $0x1c0] sm:$0xff] %vm1064, %v992
  %1122 = vst.msk [vmem:[%s3 + $0x1c8] sm:$0xff] %vm1064, %v993
  %1123 = vst.msk [vmem:[%s3 + $0x1d0] sm:$0xff] %vm1064, %v994
  %1124 = vst.msk [vmem:[%s3 + $0x1d8] sm:$0xff] %vm1064, %v995
  %1125 = vst.msk [vmem:[%s3 + $0x1e0] sm:$0xff] %vm1064, %v996
  %1126 = vst.msk [vmem:[%s3 + $0x1e8] sm:$0xff] %vm1064, %v997
  %1127 = vst.msk [vmem:[%s3 + $0x1f0] sm:$0xff] %vm1064, %v998
  %1128 = vst.msk [vmem:[%s3 + $0x1f8] sm:$0xff] %vm1064, %v999
  %1129 = vst.msk [vmem:[%s3 + $0x200] sm:$0xff] %vm1064, %v1000
  %1130 = vst.msk [vmem:[%s3 + $0x208] sm:$0xff] %vm1064, %v1001
  %1131 = vst.msk [vmem:[%s3 + $0x210] sm:$0xff] %vm1064, %v1002
  %1132 = vst.msk [vmem:[%s3 + $0x218] sm:$0xff] %vm1064, %v1003
  %1133 = vst.msk [vmem:[%s3 + $0x220] sm:$0xff] %vm1064, %v1004
  %1134 = vst.msk [vmem:[%s3 + $0x228] sm:$0xff] %vm1064, %v1005
  %1135 = vst.msk [vmem:[%s3 + $0x230] sm:$0xff] %vm1064, %v1006
  %1136 = vst.msk [vmem:[%s3 + $0x238] sm:$0xff] %vm1064, %v1007
  %1137 = vst.msk [vmem:[%s3 + $0x240] sm:$0xff] %vm1064, %v1008
  %1138 = vst.msk [vmem:[%s3 + $0x248] sm:$0xff] %vm1064, %v1009
  %1139 = vst.msk [vmem:[%s3 + $0x250] sm:$0xff] %vm1064, %v1010
  %1140 = vst.msk [vmem:[%s3 + $0x258] sm:$0xff] %vm1064, %v1011
  %1141 = vst.msk [vmem:[%s3 + $0x260] sm:$0xff] %vm1064, %v1012
  %1142 = vst.msk [vmem:[%s3 + $0x268] sm:$0xff] %vm1064, %v1013
  %1143 = vst.msk [vmem:[%s3 + $0x270] sm:$0xff] %vm1064, %v1014
  %1144 = vst.msk [vmem:[%s3 + $0x278] sm:$0xff] %vm1064, %v1015
  %1145 = vst.msk [vmem:[%s3 + $0x280] sm:$0xff] %vm1064, %v1016
  %1146 = vst.msk [vmem:[%s3 + $0x288] sm:$0xff] %vm1064, %v1017
  %1147 = vst.msk [vmem:[%s3 + $0x290] sm:$0xff] %vm1064, %v1018
  %1148 = vst.msk [vmem:[%s3 + $0x298] sm:$0xff] %vm1064, %v1019
  %1149 = vst.msk [vmem:[%s3 + $0x2a0] sm:$0xff] %vm1064, %v1020
  %1150 = vst.msk [vmem:[%s3 + $0x2a8] sm:$0xff] %vm1064, %v1021
  %1151 = vst.msk [vmem:[%s3 + $0x2b0] sm:$0xff] %vm1064, %v1022
  %1152 = vst.msk [vmem:[%s3 + $0x2b8] sm:$0xff] %vm1064, %v1023
  %1153 = vst.msk [vmem:[%s3 + $0x2c0] sm:$0xff] %vm1064, %v1024
  %1154 = vst.msk [vmem:[%s3 + $0x2c8] sm:$0xff] %vm1064, %v1025
  %1155 = vst.msk [vmem:[%s3 + $0x2d0] sm:$0xff] %vm1064, %v1026
  %1156 = vst.msk [vmem:[%s3 + $0x2d8] sm:$0xff] %vm1064, %v1027
  %1157 = vst.msk [vmem:[%s3 + $0x2e0] sm:$0xff] %vm1064, %v1028
  %1158 = vst.msk [vmem:[%s3 + $0x2e8] sm:$0xff] %vm1064, %v1029
  %1159 = vst.msk [vmem:[%s3 + $0x2f0] sm:$0xff] %vm1064, %v1030
  %1160 = vst.msk [vmem:[%s3 + $0x2f8] sm:$0xff] %vm1064, %v1031
  %1161 = vst.msk [vmem:[%s3 + $0x300] sm:$0xff] %vm1064, %v1032
  %1162 = vst.msk [vmem:[%s3 + $0x308] sm:$0xff] %vm1064, %v1033
  %1163 = vst.msk [vmem:[%s3 + $0x310] sm:$0xff] %vm1064, %v1034
  %1164 = vst.msk [vmem:[%s3 + $0x318] sm:$0xff] %vm1064, %v1035
  %1165 = vst.msk [vmem:[%s3 + $0x320] sm:$0xff] %vm1064, %v1036
  %1166 = vst.msk [vmem:[%s3 + $0x328] sm:$0xff] %vm1064, %v1037
  %1167 = vst.msk [vmem:[%s3 + $0x330] sm:$0xff] %vm1064, %v1038
  %1168 = vst.msk [vmem:[%s3 + $0x338] sm:$0xff] %vm1064, %v1039
  %1169 = vst.msk [vmem:[%s3 + $0x340] sm:$0xff] %vm1064, %v1040
  %1170 = vst.msk [vmem:[%s3 + $0x348] sm:$0xff] %vm1064, %v1041
  %1171 = vst.msk [vmem:[%s3 + $0x350] sm:$0xff] %vm1064, %v1042
  %1172 = vst.msk [vmem:[%s3 + $0x358] sm:$0xff] %vm1064, %v1043
  %1173 = vst.msk [vmem:[%s3 + $0x360] sm:$0xff] %vm1064, %v1044
  %1174 = vst.msk [vmem:[%s3 + $0x368] sm:$0xff] %vm1064, %v1045
  %1175 = vst.msk [vmem:[%s3 + $0x370] sm:$0xff] %vm1064, %v1046
  %1176 = vst.msk [vmem:[%s3 + $0x378] sm:$0xff] %vm1064, %v1047
  %1177 = vst.msk [vmem:[%s3 + $0x380] sm:$0xff] %vm1064, %v1048
  %1178 = vst.msk [vmem:[%s3 + $0x388] sm:$0xff] %vm1064, %v1049
  %1179 = vst.msk [vmem:[%s3 + $0x390] sm:$0xff] %vm1064, %v1050
  %1180 = vst.msk [vmem:[%s3 + $0x398] sm:$0xff] %vm1064, %v1051
  %1181 = vst.msk [vmem:[%s3 + $0x3a0] sm:$0xff] %vm1064, %v1052
  %1182 = vst.msk [vmem:[%s3 + $0x3a8] sm:$0xff] %vm1064, %v1053
  %1183 = vst.msk [vmem:[%s3 + $0x3b0] sm:$0xff] %vm1064, %v1054
  %1184 = vst.msk [vmem:[%s3 + $0x3b8] sm:$0xff] %vm1064, %v1055
  %1185 = vst.msk [vmem:[%s3 + $0x3c0] sm:$0xff] %vm1064, %v1056
  %1186 = vst.msk [vmem:[%s3 + $0x3c8] sm:$0xff] %vm1064, %v1057
  %1187 = vst.msk [vmem:[%s3 + $0x3d0] sm:$0xff] %vm1064, %v1058
  %1188 = vst.msk [vmem:[%s3 + $0x3d8] sm:$0xff] %vm1064, %v1059
  %1189 = vst.msk [vmem:[%s3 + $0x3e0] sm:$0xff] %vm1064, %v1060
  %1190 = vst.msk [vmem:[%s3 + $0x3e8] sm:$0xff] %vm1064, %v1061
  %1191 = vst.msk [vmem:[%s3 + $0x3f0] sm:$0xff] %vm1064, %v1062
  %1192 = vst.msk [vmem:[%s3 + $0x3f8] sm:$0xff] %vm1064, %v1063
  // Predicated region
  $region14: #{tpu_custom_call.1} parent=0 // pred_check
    _
  $region15: #{tpu_custom_call.1} parent=0 // pred_check_branch
    %1194 = sbr.rel (0) target = $region17
  $region16: #{tpu_custom_call.1} parent=0 // pred_region
    _
  $region17: #{tpu_custom_call.1} parent=0 // pred_fallthru
    _
  // Predicated region
  $region18: #{tpu_custom_call.1} parent=0 // pred_check
    _
  $region19: #{tpu_custom_call.1} parent=0 // pred_check_branch
    %1196 = sbr.rel (0) target = $region21
  $region20: #{tpu_custom_call.1} parent=0 // pred_region
    _
  $region21: #{tpu_custom_call.1} parent=0 // pred_fallthru
    _

</llo_original>
